<compile_context>
chip_gen: v6e
topology: v6e:2x2x1
jax: 0.10.0
libtpu: 0.0.40
codegen_flags: <defaults>
</compile_context>

<pallas_src>
import functools

import jax
import jax.numpy as jnp
from jax.experimental import pallas as pl
from jax.experimental.pallas import tpu as pltpu


# ----------------------------------------------------------------------------
# In-kernel helpers
# ----------------------------------------------------------------------------
def _hash_u32(x):
    """lowbias32-style integer mixer: portable (plain VPU int ops)."""
    x = x.astype(jnp.uint32)
    x = (x ^ (x >> 16)) * jnp.uint32(0x7FEB352D)
    x = (x ^ (x >> 15)) * jnp.uint32(0x846CA68B)
    x = x ^ (x >> 16)
    return x


def _dropout_p05(h, seed_u32, layer_salt, row_offset):
    """Dropout(p=0.5): Bernoulli(0.5) keep mask from a counter hash.

    The 1/(1-p) = 2.0 scale is folded into the select so the mask costs one
    select + one multiply per element.  Keep decision uses the high bit of the
    hash (better statistical quality than bit 0).
    """
    rows, cols = h.shape
    r = jax.lax.broadcasted_iota(jnp.int32, (rows, cols), 0) + row_offset
    c = jax.lax.broadcasted_iota(jnp.int32, (rows, cols), 1)
    ctr = (r * cols + c).astype(jnp.uint32)
    bits = _hash_u32(
        ctr + seed_u32 * jnp.uint32(0x9E3779B9) + jnp.uint32(layer_salt)
    )
    keep = bits < jnp.uint32(0x80000000)  # Bernoulli(0.5) from the high bit
    return jnp.where(keep, h * 2.0, 0.0)


# ----------------------------------------------------------------------------
# Kernel
# ----------------------------------------------------------------------------
def _mlp_kernel(training, block_b,
                seed_ref,                       # scalar prefetch (SMEM)
                obs_ref, act_ref,               # batch-tiled inputs
                w1o_ref, w1a_ref, b1_ref,       # layer 1 (W1 pre-split)
                w2_ref, b2_ref,                 # layer 2
                w3_ref, b3_ref,                 # output layer (w3 as (1, hid))
                out_ref):
    # ---- layer 1: split matmul replaces concat([obs, act], dim=1) @ W1 ----
    h = (jnp.dot(obs_ref[...], w1o_ref[...], preferred_element_type=jnp.float32)
         + jnp.dot(act_ref[...], w1a_ref[...], preferred_element_type=jnp.float32)
         + b1_ref[...])
    h = jnp.maximum(h, 0.0)
    if training:
        seed_u32 = seed_ref[0].astype(jnp.uint32)
        row_off = pl.program_id(0) * block_b      # decorrelate masks per tile
        h = _dropout_p05(h, seed_u32, 0x5E4A7D1B, row_off)

    # ---- layer 2: Linear + ReLU + Dropout ----------------------------------
    h = jnp.dot(h, w2_ref[...], preferred_element_type=jnp.float32) + b2_ref[...]
    h = jnp.maximum(h, 0.0)
    if training:
        h = _dropout_p05(h, seed_u32, 0x2545F491, row_off)

    # ---- output layer: Linear(hid, 1) as VPU mul + lane reduction ----------
    out_ref[...] = (jnp.sum(h * w3_ref[...], axis=-1, keepdims=True)
                    + b3_ref[...])


# ----------------------------------------------------------------------------
# Wrapper
# ----------------------------------------------------------------------------
def heavy_drop_forward(obs, act, params, *, seed=0, training=True, block_b=None):
    """Fused forward pass of the heavy-dropout reward MLP on TPU."""
    w1, b1, w2, b2, w3, b3 = params
    obs = obs.astype(jnp.float32)
    act = act.astype(jnp.float32)
    batch, obs_dim = obs.shape
    act_dim = act.shape[1]
    hid = w1.shape[1]

    # Pre-slice W1 so the kernel never concatenates along the lane axis.
    w1o = w1[:obs_dim]                      # (obs_dim, hid)
    w1a = w1[obs_dim:]                      # (act_dim, hid)
    b1r = b1.reshape(1, hid)
    b2r = b2.reshape(1, hid)
    w3r = w3.reshape(hid, 1).T              # (1, hid) for the lane reduction
    b3r = b3.reshape(1, 1)

    # Batch tiling: tile of up to 1024 rows, padded to a multiple of 8.
    if block_b is None:
        block_b = 1024 if batch > 1024 else max(8, ((batch + 7) // 8) * 8)
    pad_batch = ((batch + block_b - 1) // block_b) * block_b
    if pad_batch != batch:
        obs = jnp.pad(obs, ((0, pad_batch - batch), (0, 0)))
        act = jnp.pad(act, ((0, pad_batch - batch), (0, 0)))
    n_blocks = pad_batch // block_b

    seed_arr = jnp.array([seed], dtype=jnp.int32)
    kernel = functools.partial(_mlp_kernel, training, block_b)

    tile = lambda i, seed_r: (i, 0)      # batch-tiled arrays
    full = lambda i, seed_r: (0, 0)      # weights/biases stay resident

    flops = 2 * pad_batch * hid * (obs_dim + act_dim + hid + 1)
    bytes_accessed = 4 * (pad_batch * (obs_dim + act_dim + 1)
                          + hid * (obs_dim + act_dim + hid + 3) + 1)

    out = pl.pallas_call(
        kernel,
        out_shape=jax.ShapeDtypeStruct((pad_batch, 1), jnp.float32),
        grid_spec=pltpu.PrefetchScalarGridSpec(
            num_scalar_prefetch=1,
            grid=(n_blocks,),
            in_specs=[
                pl.BlockSpec((block_b, obs_dim), tile),   # obs
                pl.BlockSpec((block_b, act_dim), tile),   # act
                pl.BlockSpec((obs_dim, hid), full),       # w1[:obs_dim]
                pl.BlockSpec((act_dim, hid), full),       # w1[obs_dim:]
                pl.BlockSpec((1, hid), full),             # b1
                pl.BlockSpec((hid, hid), full),           # w2
                pl.BlockSpec((1, hid), full),             # b2
                pl.BlockSpec((1, hid), full),             # w3 (row)
                pl.BlockSpec((1, 1), full),               # b3
            ],
            out_specs=pl.BlockSpec((block_b, 1), tile),
        ),
        compiler_params=pltpu.CompilerParams(
            dimension_semantics=("parallel",)),
        cost_estimate=pl.CostEstimate(
            flops=flops, transcendentals=0, bytes_accessed=bytes_accessed),
    )(seed_arr, obs, act, w1o, w1a, b1r, w2, b2r, w3r, b3r)

    return out[:batch]


# ----------------------------------------------------------------------------
# Parameter init + pure-JAX reference
# ----------------------------------------------------------------------------
def init_params(key, input_dim, hid_dim):
    """nn.Linear-style U(-1/sqrt(fan_in), 1/sqrt(fan_in)); weights as [in, out]."""
    def linear(k, fan_in, fan_out):
        kw, kb = jax.random.split(k)
        lim = 1.0 / jnp.sqrt(fan_in)
        w = jax.random.uniform(kw, (fan_in, fan_out), jnp.float32, -lim, lim)
        b = jax.random.uniform(kb, (1, fan_out), jnp.float32, -lim, lim)
        return w, b

    k1, k2, k3 = jax.random.split(key, 3)
    w1, b1 = linear(k1, input_dim, hid_dim)
    w2, b2 = linear(k2, hid_dim, hid_dim)
    w3, b3 = linear(k3, hid_dim, 1)
    return (w1, b1, w2, b2, w3, b3)


def reference_forward(obs, act, params):
    """Pure-JAX eval-mode reference (dropout = identity)."""
    w1, b1, w2, b2, w3, b3 = params
    x = jnp.concatenate([obs, act], axis=1)
    h = jnp.maximum(x @ w1 + b1, 0.0)
    h = jnp.maximum(h @ w2 + b2, 0.0)
    return h @ w3 + b3


# ----------------------------------------------------------------------------
# Demo / self-check
# ----------------------------------------------------------------------------
if __name__ == "__main__":
    batch, obs_dim, act_dim, hid_dim = 8, 12, 4, 128   # hid=128: module default
    input_dim = obs_dim + act_dim

    key = jax.random.PRNGKey(0)
    k_obs, k_act, k_par = jax.random.split(key, 3)
    obs = jax.random.normal(k_obs, (batch, obs_dim), jnp.float32)
    act = jax.random.normal(k_act, (batch, act_dim), jnp.float32)
    params = init_params(k_par, input_dim, hid_dim)

    # Training-mode forward (dropout active, deterministic counter-hash masks).
    # TODO(synk): dropout masks are distributionally equivalent to torch.nn.Dropout
    # but do not reproduce the PyTorch RNG stream bit-for-bit.
    out_train = heavy_drop_forward(obs, act, params, seed=42, training=True)
    out_train = jax.block_until_ready(out_train)
    assert out_train.shape == (batch, 1)
    assert bool(jnp.isfinite(out_train).all())

    # Eval-mode forward (dropout = identity) vs pure-JAX reference.
    out_eval = heavy_drop_forward(obs, act, params, training=False)
    out_eval = jax.block_until_ready(out_eval)
    ref = reference_forward(obs, act, params)
    assert out_eval.shape == ref.shape
    assert jnp.allclose(out_eval, ref, atol=1e-4, rtol=1e-4), "mismatch vs reference"

    print("KERNEL_OK")
</pallas_src>

<mosaic_0001>
module attributes {stable_mosaic.version = 11 : i64} {
  func.func @_mlp_kernel(%arg0: i32, %arg1: memref<1xi32, #tpu.memory_space<smem>>, %arg2: memref<8x12xf32, #tpu.memory_space<vmem>>, %arg3: memref<8x4xf32, #tpu.memory_space<vmem>>, %arg4: memref<12x128xf32, #tpu.memory_space<vmem>>, %arg5: memref<4x128xf32, #tpu.memory_space<vmem>>, %arg6: memref<1x128xf32, #tpu.memory_space<vmem>>, %arg7: memref<128x128xf32, #tpu.memory_space<vmem>>, %arg8: memref<1x128xf32, #tpu.memory_space<vmem>>, %arg9: memref<1x128xf32, #tpu.memory_space<vmem>>, %arg10: memref<1x1xf32, #tpu.memory_space<vmem>>, %arg11: memref<8x1xf32, #tpu.memory_space<vmem>>) attributes {dimension_semantics = [#tpu.dimension_semantics<parallel>], iteration_bounds = array<i64: 1>, scalar_prefetch = 1 : i64, scratch_operands = 0 : i64, tpu.core_type = #tpu.core_type<tc>, window_params = [{transform_indices = @transform_0, window_bounds = array<i64: 8, 12>}, {transform_indices = @transform_1, window_bounds = array<i64: 8, 4>}, {pipeline_mode = #tpu.pipeline_mode<synchronous>, transform_indices = @transform_2, window_bounds = array<i64: 12, 128>}, {pipeline_mode = #tpu.pipeline_mode<synchronous>, transform_indices = @transform_3, window_bounds = array<i64: 4, 128>}, {pipeline_mode = #tpu.pipeline_mode<synchronous>, transform_indices = @transform_4, window_bounds = array<i64: 1, 128>}, {pipeline_mode = #tpu.pipeline_mode<synchronous>, transform_indices = @transform_5, window_bounds = array<i64: 128, 128>}, {pipeline_mode = #tpu.pipeline_mode<synchronous>, transform_indices = @transform_6, window_bounds = array<i64: 1, 128>}, {pipeline_mode = #tpu.pipeline_mode<synchronous>, transform_indices = @transform_7, window_bounds = array<i64: 1, 128>}, {pipeline_mode = #tpu.pipeline_mode<synchronous>, transform_indices = @transform_8, window_bounds = array<i64: 1, 1>}, {transform_indices = @transform_9, window_bounds = array<i64: 8, 1>}]} {
    %c0 = arith.constant 0 : index
    %c0_0 = arith.constant 0 : index
    %0 = vector.load %arg2[%c0, %c0_0] : memref<8x12xf32, #tpu.memory_space<vmem>>, vector<8x12xf32>
    %c0_1 = arith.constant 0 : index
    %c0_2 = arith.constant 0 : index
    %1 = vector.load %arg4[%c0_1, %c0_2] : memref<12x128xf32, #tpu.memory_space<vmem>>, vector<12x128xf32>
    %cst = arith.constant dense<0.000000e+00> : vector<8x128xf32>
    %2 = tpu.matmul %0, %1, %cst {dimension_numbers = #tpu.dot_dimension_numbers<[1], [0], [0], [1], [0, 0, 1, 1], [], []>} : vector<8x12xf32>, vector<12x128xf32>, vector<8x128xf32> -> vector<8x128xf32>
    %c0_3 = arith.constant 0 : index
    %c0_4 = arith.constant 0 : index
    %3 = vector.load %arg3[%c0_3, %c0_4] : memref<8x4xf32, #tpu.memory_space<vmem>>, vector<8x4xf32>
    %c0_5 = arith.constant 0 : index
    %c0_6 = arith.constant 0 : index
    %4 = vector.load %arg5[%c0_5, %c0_6] : memref<4x128xf32, #tpu.memory_space<vmem>>, vector<4x128xf32>
    %cst_7 = arith.constant dense<0.000000e+00> : vector<8x128xf32>
    %5 = tpu.matmul %3, %4, %cst_7 {dimension_numbers = #tpu.dot_dimension_numbers<[1], [0], [0], [1], [0, 0, 1, 1], [], []>} : vector<8x4xf32>, vector<4x128xf32>, vector<8x128xf32> -> vector<8x128xf32>
    %6 = arith.addf %2, %5 : vector<8x128xf32>
    %c0_8 = arith.constant 0 : index
    %c0_9 = arith.constant 0 : index
    %7 = vector.load %arg6[%c0_8, %c0_9] : memref<1x128xf32, #tpu.memory_space<vmem>>, vector<1x128xf32>
    %8 = vector.broadcast %7 : vector<1x128xf32> to vector<8x128xf32>
    %9 = arith.addf %6, %8 : vector<8x128xf32>
    %cst_10 = arith.constant 0.000000e+00 : f32
    %10 = vector.broadcast %cst_10 : f32 to vector<8x128xf32>
    %11 = arith.maximumf %9, %10 : vector<8x128xf32>
    %c0_11 = arith.constant 0 : index
    %12 = memref.load %arg1[%c0_11] : memref<1xi32, #tpu.memory_space<smem>>
    %c8_i32 = arith.constant 8 : i32
    %13 = arith.muli %arg0, %c8_i32 : i32
    %14 = tpu.iota {dimensions = array<i32: 0>} : vector<8x128xi32>
    %15 = vector.broadcast %13 : i32 to vector<8x128xi32>
    %16 = arith.addi %14, %15 : vector<8x128xi32>
    %17 = tpu.iota {dimensions = array<i32: 1>} : vector<8x128xi32>
    %c128_i32 = arith.constant 128 : i32
    %18 = vector.broadcast %c128_i32 : i32 to vector<8x128xi32>
    %19 = arith.muli %16, %18 : vector<8x128xi32>
    %20 = arith.addi %19, %17 : vector<8x128xi32>
    %c-1640531527_i32 = arith.constant -1640531527 : i32
    %21 = arith.muli %12, %c-1640531527_i32 : i32
    %22 = vector.broadcast %21 : i32 to vector<8x128xi32>
    %23 = arith.addi %20, %22 : vector<8x128xi32>
    %c1581939995_i32 = arith.constant 1581939995 : i32
    %24 = vector.broadcast %c1581939995_i32 : i32 to vector<8x128xi32>
    %25 = arith.addi %23, %24 : vector<8x128xi32>
    %c16_i32 = arith.constant 16 : i32
    %26 = vector.broadcast %c16_i32 : i32 to vector<8x128xi32>
    %27 = arith.shrui %25, %26 : vector<8x128xi32>
    %28 = arith.xori %25, %27 : vector<8x128xi32>
    %c2146121005_i32 = arith.constant 2146121005 : i32
    %29 = vector.broadcast %c2146121005_i32 : i32 to vector<8x128xi32>
    %30 = arith.muli %28, %29 : vector<8x128xi32>
    %c15_i32 = arith.constant 15 : i32
    %31 = vector.broadcast %c15_i32 : i32 to vector<8x128xi32>
    %32 = arith.shrui %30, %31 : vector<8x128xi32>
    %33 = arith.xori %30, %32 : vector<8x128xi32>
    %c-2073254261_i32 = arith.constant -2073254261 : i32
    %34 = vector.broadcast %c-2073254261_i32 : i32 to vector<8x128xi32>
    %35 = arith.muli %33, %34 : vector<8x128xi32>
    %c16_i32_12 = arith.constant 16 : i32
    %36 = vector.broadcast %c16_i32_12 : i32 to vector<8x128xi32>
    %37 = arith.shrui %35, %36 : vector<8x128xi32>
    %38 = arith.xori %35, %37 : vector<8x128xi32>
    %c-2147483648_i32 = arith.constant -2147483648 : i32
    %39 = vector.broadcast %c-2147483648_i32 : i32 to vector<8x128xi32>
    %40 = arith.cmpi ult, %38, %39 : vector<8x128xi32>
    %cst_13 = arith.constant 2.000000e+00 : f32
    %41 = vector.broadcast %cst_13 : f32 to vector<8x128xf32>
    %42 = arith.mulf %11, %41 : vector<8x128xf32>
    %cst_14 = arith.constant 0.000000e+00 : f32
    %43 = vector.broadcast %cst_14 : f32 to vector<8x128xf32>
    %44 = arith.select %40, %42, %43 : vector<8x128xi1>, vector<8x128xf32>
    %c0_15 = arith.constant 0 : index
    %c0_16 = arith.constant 0 : index
    %45 = vector.load %arg7[%c0_15, %c0_16] : memref<128x128xf32, #tpu.memory_space<vmem>>, vector<128x128xf32>
    %cst_17 = arith.constant dense<0.000000e+00> : vector<8x128xf32>
    %46 = tpu.matmul %44, %45, %cst_17 {dimension_numbers = #tpu.dot_dimension_numbers<[1], [0], [0], [1], [0, 0, 1, 1], [], []>} : vector<8x128xf32>, vector<128x128xf32>, vector<8x128xf32> -> vector<8x128xf32>
    %c0_18 = arith.constant 0 : index
    %c0_19 = arith.constant 0 : index
    %47 = vector.load %arg8[%c0_18, %c0_19] : memref<1x128xf32, #tpu.memory_space<vmem>>, vector<1x128xf32>
    %48 = vector.broadcast %47 : vector<1x128xf32> to vector<8x128xf32>
    %49 = arith.addf %46, %48 : vector<8x128xf32>
    %cst_20 = arith.constant 0.000000e+00 : f32
    %50 = vector.broadcast %cst_20 : f32 to vector<8x128xf32>
    %51 = arith.maximumf %49, %50 : vector<8x128xf32>
    %52 = tpu.iota {dimensions = array<i32: 0>} : vector<8x128xi32>
    %53 = vector.broadcast %13 : i32 to vector<8x128xi32>
    %54 = arith.addi %52, %53 : vector<8x128xi32>
    %55 = tpu.iota {dimensions = array<i32: 1>} : vector<8x128xi32>
    %c128_i32_21 = arith.constant 128 : i32
    %56 = vector.broadcast %c128_i32_21 : i32 to vector<8x128xi32>
    %57 = arith.muli %54, %56 : vector<8x128xi32>
    %58 = arith.addi %57, %55 : vector<8x128xi32>
    %c-1640531527_i32_22 = arith.constant -1640531527 : i32
    %59 = arith.muli %12, %c-1640531527_i32_22 : i32
    %60 = vector.broadcast %59 : i32 to vector<8x128xi32>
    %61 = arith.addi %58, %60 : vector<8x128xi32>
    %c625341585_i32 = arith.constant 625341585 : i32
    %62 = vector.broadcast %c625341585_i32 : i32 to vector<8x128xi32>
    %63 = arith.addi %61, %62 : vector<8x128xi32>
    %c16_i32_23 = arith.constant 16 : i32
    %64 = vector.broadcast %c16_i32_23 : i32 to vector<8x128xi32>
    %65 = arith.shrui %63, %64 : vector<8x128xi32>
    %66 = arith.xori %63, %65 : vector<8x128xi32>
    %c2146121005_i32_24 = arith.constant 2146121005 : i32
    %67 = vector.broadcast %c2146121005_i32_24 : i32 to vector<8x128xi32>
    %68 = arith.muli %66, %67 : vector<8x128xi32>
    %c15_i32_25 = arith.constant 15 : i32
    %69 = vector.broadcast %c15_i32_25 : i32 to vector<8x128xi32>
    %70 = arith.shrui %68, %69 : vector<8x128xi32>
    %71 = arith.xori %68, %70 : vector<8x128xi32>
    %c-2073254261_i32_26 = arith.constant -2073254261 : i32
    %72 = vector.broadcast %c-2073254261_i32_26 : i32 to vector<8x128xi32>
    %73 = arith.muli %71, %72 : vector<8x128xi32>
    %c16_i32_27 = arith.constant 16 : i32
    %74 = vector.broadcast %c16_i32_27 : i32 to vector<8x128xi32>
    %75 = arith.shrui %73, %74 : vector<8x128xi32>
    %76 = arith.xori %73, %75 : vector<8x128xi32>
    %c-2147483648_i32_28 = arith.constant -2147483648 : i32
    %77 = vector.broadcast %c-2147483648_i32_28 : i32 to vector<8x128xi32>
    %78 = arith.cmpi ult, %76, %77 : vector<8x128xi32>
    %cst_29 = arith.constant 2.000000e+00 : f32
    %79 = vector.broadcast %cst_29 : f32 to vector<8x128xf32>
    %80 = arith.mulf %51, %79 : vector<8x128xf32>
    %cst_30 = arith.constant 0.000000e+00 : f32
    %81 = vector.broadcast %cst_30 : f32 to vector<8x128xf32>
    %82 = arith.select %78, %80, %81 : vector<8x128xi1>, vector<8x128xf32>
    %c0_31 = arith.constant 0 : index
    %c0_32 = arith.constant 0 : index
    %83 = vector.load %arg9[%c0_31, %c0_32] : memref<1x128xf32, #tpu.memory_space<vmem>>, vector<1x128xf32>
    %84 = vector.broadcast %83 : vector<1x128xf32> to vector<8x128xf32>
    %85 = arith.mulf %82, %84 : vector<8x128xf32>
    %cst_33 = arith.constant dense<0.000000e+00> : vector<8xf32>
    %86 = vector.multi_reduction <add>, %85, %cst_33 [1] : vector<8x128xf32> to vector<8xf32>
    %87 = vector.shape_cast %86 : vector<8xf32> to vector<8x1xf32>
    %c0_34 = arith.constant 0 : index
    %c0_35 = arith.constant 0 : index
    %88 = vector.load %arg10[%c0_34, %c0_35] : memref<1x1xf32, #tpu.memory_space<vmem>>, vector<1x1xf32>
    %89 = vector.broadcast %88 : vector<1x1xf32> to vector<8x1xf32>
    %90 = arith.addf %87, %89 : vector<8x1xf32>
    %c0_36 = arith.constant 0 : index
    %c0_37 = arith.constant 0 : index
    %91 = vector.load %arg11[%c0_36, %c0_37] : memref<8x1xf32, #tpu.memory_space<vmem>>, vector<8x1xf32>
    tpu.vector_store %arg11[%c0_36, %c0_37], %90 {strides = array<i32>} : memref<8x1xf32, #tpu.memory_space<vmem>>, vector<8x1xf32>,
    return
  }
  func.func @transform_0(%arg0: i32, %arg1: memref<1xi32, #tpu.memory_space<smem>>) -> (i32, i32) {
    %c0_i32 = arith.constant 0 : i32
    %c0_i32_0 = arith.constant 0 : i32
    return %arg0, %c0_i32 : i32, i32
  }
  func.func @transform_1(%arg0: i32, %arg1: memref<1xi32, #tpu.memory_space<smem>>) -> (i32, i32) {
    %c0_i32 = arith.constant 0 : i32
    %c0_i32_0 = arith.constant 0 : i32
    return %arg0, %c0_i32 : i32, i32
  }
  func.func @transform_2(%arg0: i32, %arg1: memref<1xi32, #tpu.memory_space<smem>>) -> (i32, i32) {
    %c0_i32 = arith.constant 0 : i32
    %c0_i32_0 = arith.constant 0 : i32
    %c0_i32_1 = arith.constant 0 : i32
    return %c0_i32, %c0_i32_0 : i32, i32
  }
  func.func @transform_3(%arg0: i32, %arg1: memref<1xi32, #tpu.memory_space<smem>>) -> (i32, i32) {
    %c0_i32 = arith.constant 0 : i32
    %c0_i32_0 = arith.constant 0 : i32
    %c0_i32_1 = arith.constant 0 : i32
    return %c0_i32, %c0_i32_0 : i32, i32
  }
  func.func @transform_4(%arg0: i32, %arg1: memref<1xi32, #tpu.memory_space<smem>>) -> (i32, i32) {
    %c0_i32 = arith.constant 0 : i32
    %c0_i32_0 = arith.constant 0 : i32
    %c0_i32_1 = arith.constant 0 : i32
    return %c0_i32, %c0_i32_0 : i32, i32
  }
  func.func @transform_5(%arg0: i32, %arg1: memref<1xi32, #tpu.memory_space<smem>>) -> (i32, i32) {
    %c0_i32 = arith.constant 0 : i32
    %c0_i32_0 = arith.constant 0 : i32
    %c0_i32_1 = arith.constant 0 : i32
    return %c0_i32, %c0_i32_0 : i32, i32
  }
  func.func @transform_6(%arg0: i32, %arg1: memref<1xi32, #tpu.memory_space<smem>>) -> (i32, i32) {
    %c0_i32 = arith.constant 0 : i32
    %c0_i32_0 = arith.constant 0 : i32
    %c0_i32_1 = arith.constant 0 : i32
    return %c0_i32, %c0_i32_0 : i32, i32
  }
  func.func @transform_7(%arg0: i32, %arg1: memref<1xi32, #tpu.memory_space<smem>>) -> (i32, i32) {
    %c0_i32 = arith.constant 0 : i32
    %c0_i32_0 = arith.constant 0 : i32
    %c0_i32_1 = arith.constant 0 : i32
    return %c0_i32, %c0_i32_0 : i32, i32
  }
  func.func @transform_8(%arg0: i32, %arg1: memref<1xi32, #tpu.memory_space<smem>>) -> (i32, i32) {
    %c0_i32 = arith.constant 0 : i32
    %c0_i32_0 = arith.constant 0 : i32
    %c0_i32_1 = arith.constant 0 : i32
    return %c0_i32, %c0_i32_0 : i32, i32
  }
  func.func @transform_9(%arg0: i32, %arg1: memref<1xi32, #tpu.memory_space<smem>>) -> (i32, i32) {
    %c0_i32 = arith.constant 0 : i32
    %c0_i32_0 = arith.constant 0 : i32
    return %arg0, %c0_i32 : i32, i32
  }
}

</mosaic_0001>

<llo_original>
// kernel: tpu_custom_call.1
$region0: #{tpu_custom_call.1}
  #allocation0 [shape = 'u32[]', space=smem, size = 0x4, offset = 0x4, fixed_abs, tag = 'smem constant byte address 0x4 - core index']
  #allocation1 [shape = 'u32[144,128]{1,0:T(1,128)}', space=vmem, size = 0x12000, scoped, tag = 'internal scratch']
  #allocation2 [shape = 's32[1]{0}', space=sflag, size = 0x4, scoped, tag = 'scoped memory for tpu_custom_call.1']
  #allocation3 [shape = 's32[1]{0:T(128)S(6)}', space=smem, size = 0x200, scoped, tag = 'prefetched SMEM operand 0']
  #allocation4 [shape = 'f32[1,1]{1,0:T(1,128)S(1)}', space=vmem, size = 0x200, scoped, tag = 'scoped memory for tpu_custom_call.1']
  %s0 = inlined_call_operand.<no memory space> [shape: s32[1], index: 0, kind: input, shape index: {}]
  %s1 = inlined_call_operand.hbm [shape: f32[8,12], index: 1, kind: input, shape index: {}]
  %s2 = inlined_call_operand.vmem [shape: f32[8,4], index: 2, kind: input, shape index: {}]
  %s3 = inlined_call_operand.vmem [shape: f32[12,128], index: 3, kind: input, shape index: {}]
  %s4 = inlined_call_operand.vmem [shape: f32[4,128], index: 4, kind: input, shape index: {}]
  %s5 = inlined_call_operand.vmem [shape: f32[1,128], index: 5, kind: input, shape index: {}]
  %s6 = inlined_call_operand.hbm [shape: f32[128,128], index: 6, kind: input, shape index: {}]
  %s7 = inlined_call_operand.vmem [shape: f32[1,128], index: 7, kind: input, shape index: {}]
  %s8 = inlined_call_operand.vmem [shape: f32[1,128], index: 8, kind: input, shape index: {}]
  %s9 = inlined_call_operand.<no memory space> [shape: f32[1,1], index: 9, kind: input, shape index: {}]
  %s10 = inlined_call_operand.vmem [shape: f32[8,1], index: 10, kind: output, shape index: {}]
  %s11 = sld [smem:[#allocation0]]
  $region54: #{tpu_custom_call.1} parent=0
    _
  %s13 = ssub.s32 1, %s11
  %s14 = scalar_select 0, %s13, %s11
  %15 = sst [smem:[#allocation3]] %s0
  %v16 = vstv %s9
  %17 = vst [vmem:[#allocation4] sm:$0x1] %v16
  $region1: #{tpu_custom_call.1} parent=0
    #allocation5 [shape = 'u8[4096]{0}', space=vmem, size = 0x1000, scoped, tag = 'input window, operand 1, single buffered']
    #allocation6 [shape = 's32[1]{0}', space=sflag, size = 0x4, scoped, tag = 'scoped memory for tpu_custom_call.1']
    #allocation7 [shape = 'u8[65536]{0}', space=vmem, size = 0x10000, scoped, tag = 'input window, operand 6, single buffered']
    #allocation8 [shape = 's32[1]{0}', space=sflag, size = 0x4, scoped, tag = 'scoped memory for tpu_custom_call.1']
    %18 = vsyncpa [#allocation6], 0
    %19 = vsyncpa [#allocation8], 0
    // Predicated region
    $region2: #{tpu_custom_call.1} parent=1 // pred_check
      _
    $region3: #{tpu_custom_call.1} parent=1 // pred_check_branch
      %21 = sbr.rel (0) target = $region5
    $region4: #{tpu_custom_call.1} parent=1 // pred_region
      %s23 = ssub.s32 128, 128
      %24 = vsyncadd [#allocation6], %s23
      %s26 = sshll.u32 [#allocation5], 4
      %s27 = int_to_ptr.vmem [resolvable:$true] %s26
      %29 = dma.hbm_to_vmem [thread:$0]  %s1, 128, %s27, [#allocation6]
    $region5: #{tpu_custom_call.1} parent=1 // pred_fallthru
      _
    // Predicated region
    $region6: #{tpu_custom_call.1} parent=1 // pred_check
      _
    $region7: #{tpu_custom_call.1} parent=1 // pred_check_branch
      %31 = sbr.rel (0) target = $region9
    $region8: #{tpu_custom_call.1} parent=1 // pred_region
      _
    $region9: #{tpu_custom_call.1} parent=1 // pred_fallthru
      _
    // Predicated region
    $region10: #{tpu_custom_call.1} parent=1 // pred_check
      _
    $region11: #{tpu_custom_call.1} parent=1 // pred_check_branch
      %33 = sbr.rel (0) target = $region13
    $region12: #{tpu_custom_call.1} parent=1 // pred_region
      _
    $region13: #{tpu_custom_call.1} parent=1 // pred_fallthru
      _
    // Predicated region
    $region14: #{tpu_custom_call.1} parent=1 // pred_check
      _
    $region15: #{tpu_custom_call.1} parent=1 // pred_check_branch
      %35 = sbr.rel (0) target = $region17
    $region16: #{tpu_custom_call.1} parent=1 // pred_region
      _
    $region17: #{tpu_custom_call.1} parent=1 // pred_fallthru
      _
    // Predicated region
    $region18: #{tpu_custom_call.1} parent=1 // pred_check
      _
    $region19: #{tpu_custom_call.1} parent=1 // pred_check_branch
      %37 = sbr.rel (0) target = $region21
    $region20: #{tpu_custom_call.1} parent=1 // pred_region
      _
    $region21: #{tpu_custom_call.1} parent=1 // pred_fallthru
      _
    // Predicated region
    $region22: #{tpu_custom_call.1} parent=1 // pred_check
      _
    $region23: #{tpu_custom_call.1} parent=1 // pred_check_branch
      %39 = sbr.rel (0) target = $region25
    $region24: #{tpu_custom_call.1} parent=1 // pred_region
      %s41 = ssub.s32 2048, 2048
      %42 = vsyncadd [#allocation8], %s41
      %s43 = sshll.u32 [#allocation7], 4
      %s44 = int_to_ptr.vmem [resolvable:$true] %s43
      %49 = dma.hbm_to_vmem [thread:$0]  %s6, 2048, %s44, [#allocation8], 128, 128, 8
    $region25: #{tpu_custom_call.1} parent=1 // pred_fallthru
      _
    // Predicated region
    $region26: #{tpu_custom_call.1} parent=1 // pred_check
      _
    $region27: #{tpu_custom_call.1} parent=1 // pred_check_branch
      %51 = sbr.rel (0) target = $region29
    $region28: #{tpu_custom_call.1} parent=1 // pred_region
      _
    $region29: #{tpu_custom_call.1} parent=1 // pred_fallthru
      _
    // Predicated region
    $region30: #{tpu_custom_call.1} parent=1 // pred_check
      _
    $region31: #{tpu_custom_call.1} parent=1 // pred_check_branch
      %53 = sbr.rel (0) target = $region33
    $region32: #{tpu_custom_call.1} parent=1 // pred_region
      _
    $region33: #{tpu_custom_call.1} parent=1 // pred_fallthru
      _
    // Predicated region
    $region34: #{tpu_custom_call.1} parent=1 // pred_check
      _
    $region35: #{tpu_custom_call.1} parent=1 // pred_check_branch
      %55 = sbr.rel (0) target = $region37
    $region36: #{tpu_custom_call.1} parent=1 // pred_region
      _
    $region37: #{tpu_custom_call.1} parent=1 // pred_fallthru
      _
    // Predicated region
    $region38: #{tpu_custom_call.1} parent=1 // pred_check
      _
    $region39: #{tpu_custom_call.1} parent=1 // pred_check_branch
      %57 = sbr.rel (0) target = $region41
    $region40: #{tpu_custom_call.1} parent=1 // pred_region
      %58 = dma.done [#allocation6], 128
    $region41: #{tpu_custom_call.1} parent=1 // pred_fallthru
      _
    // Predicated region
    $region42: #{tpu_custom_call.1} parent=1 // pred_check
      _
    $region43: #{tpu_custom_call.1} parent=1 // pred_check_branch
      %60 = sbr.rel (0) target = $region45
    $region44: #{tpu_custom_call.1} parent=1 // pred_region
      %61 = dma.done [#allocation8], 2048
    $region45: #{tpu_custom_call.1} parent=1 // pred_fallthru
      _
    %v62 = vld [vmem:[#allocation5] sm:$0xff]
    %v63 = vld [vmem:[%s3] sm:$0xff]
    %v64 = vld [vmem:[%s3 + $0x8] sm:$0xf]
    %v65 = vld [vmem:[%s2] sm:$0xff]
    %v66 = vld [vmem:[%s4] sm:$0xf]
    %vm67 = vcmask 31744
    %v69 = vsel %vm67, %v65, 0
    %vm71 = vcmask 1043456
    %v73 = vsel %vm71, %v66, 0
    %75 = vmatprep.subr.mxu0 0.0
    %76 = vmatpush1.msra.mxu0 0.0
    %77 = vmatprep.subr.mxu0 0.0
    %78 = vmatpush1.msra.mxu0 0.0
    %79 = vmatprep.subr.mxu0 0.0
    %80 = vmatpush1.msra.mxu0 0.0
    %81 = vmatprep.subr.mxu0 0.0
    %82 = vmatpush1.msra.mxu0 0.0
    %83 = vmatprep.subr.mxu0 0.0
    %84 = vmatpush1.msra.mxu0 0.0
    %85 = vmatprep.subr.mxu0 0.0
    %86 = vmatpush1.msra.mxu0 0.0
    %87 = vmatprep.subr.mxu0 0.0
    %88 = vmatpush1.msra.mxu0 0.0
    %89 = vmatprep.subr.mxu0 0.0
    %90 = vmatpush1.msra.mxu0 0.0
    %91 = vmatprep.subr.mxu0 0.0
    %92 = vmatpush1.msra.mxu0 0.0
    %93 = vmatprep.subr.mxu0 0.0
    %94 = vmatpush1.msra.mxu0 0.0
    %95 = vmatprep.subr.mxu0 0.0
    %96 = vmatpush1.msra.mxu0 0.0
    %97 = vmatprep.subr.mxu0 0.0
    %98 = vmatpush1.msra.mxu0 0.0
    %99 = vmatprep.subr.mxu0 0.0
    %100 = vmatpush1.msra.mxu0 0.0
    %101 = vmatprep.subr.mxu0 0.0
    %102 = vmatpush1.msra.mxu0 0.0
    %103 = vmatprep.subr.mxu0 0.0
    %104 = vmatpush1.msra.mxu0 0.0
    %105 = vmatprep.subr.mxu0 0.0
    %106 = vmatpush1.msra.mxu0 %v73
    %107 = vmatprep.subr.mxu0 0.0
    %108 = vmatpush2.msra.mxu0 0.0
    %109 = vmatprep.subr.mxu0 0.0
    %110 = vmatpush2.msra.mxu0 0.0
    %111 = vmatprep.subr.mxu0 0.0
    %112 = vmatpush2.msra.mxu0 0.0
    %113 = vmatprep.subr.mxu0 0.0
    %114 = vmatpush2.msra.mxu0 0.0
    %115 = vmatprep.subr.mxu0 0.0
    %116 = vmatpush2.msra.mxu0 0.0
    %117 = vmatprep.subr.mxu0 0.0
    %118 = vmatpush2.msra.mxu0 0.0
    %119 = vmatprep.subr.mxu0 0.0
    %120 = vmatpush2.msra.mxu0 0.0
    %121 = vmatprep.subr.mxu0 0.0
    %122 = vmatpush2.msra.mxu0 0.0
    %123 = vmatprep.subr.mxu0 0.0
    %124 = vmatpush2.msra.mxu0 0.0
    %125 = vmatprep.subr.mxu0 0.0
    %126 = vmatpush2.msra.mxu0 0.0
    %127 = vmatprep.subr.mxu0 0.0
    %128 = vmatpush2.msra.mxu0 0.0
    %129 = vmatprep.subr.mxu0 0.0
    %130 = vmatpush2.msra.mxu0 0.0
    %131 = vmatprep.subr.mxu0 0.0
    %132 = vmatpush2.msra.mxu0 0.0
    %133 = vmatprep.subr.mxu0 0.0
    %134 = vmatpush2.msra.mxu0 0.0
    %135 = vmatprep.subr.mxu0 0.0
    %136 = vmatpush2.msra.mxu0 0.0
    %137 = vmatprep.subr.mxu0 0.0
    %138 = vmatpush2.msra.mxu0 0.0
    %139 = vmatprep.mubr.f32.mxu0 0.0
    %140 = vmatmul.mubr.f32.gmra.mxu0 %v69
    %v141 = vpop.f32.mrf.mxu0
    %v142 = vadd.f32 0.0, %v141
    %v143 = vpop.f32.mrf.mxu0
    %144 = vdwg.mxu0
    %vm145 = vcmask 97280
    %v147 = vsel %vm145, %v62, 0
    %v150 = vsel %vm71, %v64, 0
    %152 = vmatprep.subr.mxu0 0.0
    %153 = vmatpush1.msra.mxu0 0.0
    %154 = vmatprep.subr.mxu0 0.0
    %155 = vmatpush1.msra.mxu0 0.0
    %156 = vmatprep.subr.mxu0 0.0
    %157 = vmatpush1.msra.mxu0 0.0
    %158 = vmatprep.subr.mxu0 0.0
    %159 = vmatpush1.msra.mxu0 0.0
    %160 = vmatprep.subr.mxu0 0.0
    %161 = vmatpush1.msra.mxu0 0.0
    %162 = vmatprep.subr.mxu0 0.0
    %163 = vmatpush1.msra.mxu0 0.0
    %164 = vmatprep.subr.mxu0 0.0
    %165 = vmatpush1.msra.mxu0 0.0
    %166 = vmatprep.subr.mxu0 0.0
    %167 = vmatpush1.msra.mxu0 0.0
    %168 = vmatprep.subr.mxu0 0.0
    %169 = vmatpush1.msra.mxu0 0.0
    %170 = vmatprep.subr.mxu0 0.0
    %171 = vmatpush1.msra.mxu0 0.0
    %172 = vmatprep.subr.mxu0 0.0
    %173 = vmatpush1.msra.mxu0 0.0
    %174 = vmatprep.subr.mxu0 0.0
    %175 = vmatpush1.msra.mxu0 0.0
    %176 = vmatprep.subr.mxu0 0.0
    %177 = vmatpush1.msra.mxu0 0.0
    %178 = vmatprep.subr.mxu0 0.0
    %179 = vmatpush1.msra.mxu0 0.0
    %180 = vmatprep.subr.mxu0 0.0
    %181 = vmatpush1.msra.mxu0 %v150
    %182 = vmatprep.subr.mxu0 0.0
    %183 = vmatpush1.msra.mxu0 %v63
    %184 = vmatprep.subr.mxu0 0.0
    %185 = vmatpush2.msra.mxu0 0.0
    %186 = vmatprep.subr.mxu0 0.0
    %187 = vmatpush2.msra.mxu0 0.0
    %188 = vmatprep.subr.mxu0 0.0
    %189 = vmatpush2.msra.mxu0 0.0
    %190 = vmatprep.subr.mxu0 0.0
    %191 = vmatpush2.msra.mxu0 0.0
    %192 = vmatprep.subr.mxu0 0.0
    %193 = vmatpush2.msra.mxu0 0.0
    %194 = vmatprep.subr.mxu0 0.0
    %195 = vmatpush2.msra.mxu0 0.0
    %196 = vmatprep.subr.mxu0 0.0
    %197 = vmatpush2.msra.mxu0 0.0
    %198 = vmatprep.subr.mxu0 0.0
    %199 = vmatpush2.msra.mxu0 0.0
    %200 = vmatprep.subr.mxu0 0.0
    %201 = vmatpush2.msra.mxu0 0.0
    %202 = vmatprep.subr.mxu0 0.0
    %203 = vmatpush2.msra.mxu0 0.0
    %204 = vmatprep.subr.mxu0 0.0
    %205 = vmatpush2.msra.mxu0 0.0
    %206 = vmatprep.subr.mxu0 0.0
    %207 = vmatpush2.msra.mxu0 0.0
    %208 = vmatprep.subr.mxu0 0.0
    %209 = vmatpush2.msra.mxu0 0.0
    %210 = vmatprep.subr.mxu0 0.0
    %211 = vmatpush2.msra.mxu0 0.0
    %212 = vmatprep.subr.mxu0 0.0
    %213 = vmatpush2.msra.mxu0 0.0
    %214 = vmatprep.subr.mxu0 0.0
    %215 = vmatpush2.msra.mxu0 0.0
    %216 = vmatprep.mubr.f32.mxu0 0.0
    %217 = vmatmul.mubr.f32.gmra.mxu0 %v147
    %v218 = vpop.f32.mrf.mxu0
    %v219 = vadd.f32 %v142, %v218
    %v220 = vpop.f32.mrf.mxu0
    %221 = vdwg.mxu0
    %v222 = vld [vmem:[%s5] sm:$0x1]
    %v224 = vlaneseq
    %v225 = vshrl.u32 %v224, 7
    %v226 = vsub.s32 0, %v225
    %v227 = vrot.slane %v222, %v226
    %v229 = vadd.f32 %v219, %v227
    %v230 = vmax.f32 %v229, 0.0
    %s231 = sld [smem:[#allocation3]]
    %s232 = smul.u32 0, 8
    %v233 = vlaneseq
    %v234 = vshrl.u32 %v233, 7
    %v235 = vstv %s232
    %v236 = vadd.s32 %v234, %v235
    %v237 = vlaneseq
    %v238 = vand.u32 %v237, 127
    %v239 = vmul.u32 %v236, 128
    %v240 = vadd.s32 %v239, %v238
    %s241 = smul.u32 %s231, 2654435769
    %v242 = vstv %s241
    %v243 = vadd.s32 %v240, %v242
    %v244 = vadd.s32 %v243, 1581939995
    %v245 = vshrl.u32 %v244, 16
    %v246 = vxor.u32 %v244, %v245
    %v247 = vmul.u32 %v246, 2146121005
    %v248 = vshrl.u32 %v247, 15
    %v249 = vxor.u32 %v247, %v248
    %v250 = vmul.u32 %v249, 2221713035
    %v251 = vshrl.u32 %v250, 16
    %v252 = vxor.u32 %v250, %v251
    %vm253 = vcmp.lt.u32.totalorder %v252, 2147483648
    %v254 = vmul.f32 %v230, 2.0
    %v255 = vsel %vm253, %v254, 0.0
    %v256 = vld [vmem:[#allocation7] sm:$0xff]
    %v257 = vld [vmem:[#allocation7 + $0x8] sm:$0xff]
    %v258 = vld [vmem:[#allocation7 + $0x10] sm:$0xff]
    %v259 = vld [vmem:[#allocation7 + $0x18] sm:$0xff]
    %v260 = vld [vmem:[#allocation7 + $0x20] sm:$0xff]
    %v261 = vld [vmem:[#allocation7 + $0x28] sm:$0xff]
    %v262 = vld [vmem:[#allocation7 + $0x30] sm:$0xff]
    %v263 = vld [vmem:[#allocation7 + $0x38] sm:$0xff]
    %v264 = vld [vmem:[#allocation7 + $0x40] sm:$0xff]
    %v265 = vld [vmem:[#allocation7 + $0x48] sm:$0xff]
    %v266 = vld [vmem:[#allocation7 + $0x50] sm:$0xff]
    %v267 = vld [vmem:[#allocation7 + $0x58] sm:$0xff]
    %v268 = vld [vmem:[#allocation7 + $0x60] sm:$0xff]
    %v269 = vld [vmem:[#allocation7 + $0x68] sm:$0xff]
    %v270 = vld [vmem:[#allocation7 + $0x70] sm:$0xff]
    %v271 = vld [vmem:[#allocation7 + $0x78] sm:$0xff]
    %v272 = vld [vmem:[%s7] sm:$0x1]
    %v274 = vlaneseq
    %v275 = vshrl.u32 %v274, 7
    %v276 = vsub.s32 0, %v275
    %v277 = vrot.slane %v272, %v276
    %279 = vmatprep.subr.mxu0 0.0
    %280 = vmatpush1.msra.mxu0 %v271
    %281 = vmatprep.subr.mxu0 0.0
    %282 = vmatpush1.msra.mxu0 %v270
    %283 = vmatprep.subr.mxu0 0.0
    %284 = vmatpush1.msra.mxu0 %v269
    %285 = vmatprep.subr.mxu0 0.0
    %286 = vmatpush1.msra.mxu0 %v268
    %287 = vmatprep.subr.mxu0 0.0
    %288 = vmatpush1.msra.mxu0 %v267
    %289 = vmatprep.subr.mxu0 0.0
    %290 = vmatpush1.msra.mxu0 %v266
    %291 = vmatprep.subr.mxu0 0.0
    %292 = vmatpush1.msra.mxu0 %v265
    %293 = vmatprep.subr.mxu0 0.0
    %294 = vmatpush1.msra.mxu0 %v264
    %295 = vmatprep.subr.mxu0 0.0
    %296 = vmatpush1.msra.mxu0 %v263
    %297 = vmatprep.subr.mxu0 0.0
    %298 = vmatpush1.msra.mxu0 %v262
    %299 = vmatprep.subr.mxu0 0.0
    %300 = vmatpush1.msra.mxu0 %v261
    %301 = vmatprep.subr.mxu0 0.0
    %302 = vmatpush1.msra.mxu0 %v260
    %303 = vmatprep.subr.mxu0 0.0
    %304 = vmatpush1.msra.mxu0 %v259
    %305 = vmatprep.subr.mxu0 0.0
    %306 = vmatpush1.msra.mxu0 %v258
    %307 = vmatprep.subr.mxu0 0.0
    %308 = vmatpush1.msra.mxu0 %v257
    %309 = vmatprep.subr.mxu0 0.0
    %310 = vmatpush1.msra.mxu0 %v256
    %311 = vmatprep.subr.mxu0 0.0
    %312 = vmatpush2.msra.mxu0 0.0
    %313 = vmatprep.subr.mxu0 0.0
    %314 = vmatpush2.msra.mxu0 0.0
    %315 = vmatprep.subr.mxu0 0.0
    %316 = vmatpush2.msra.mxu0 0.0
    %317 = vmatprep.subr.mxu0 0.0
    %318 = vmatpush2.msra.mxu0 0.0
    %319 = vmatprep.subr.mxu0 0.0
    %320 = vmatpush2.msra.mxu0 0.0
    %321 = vmatprep.subr.mxu0 0.0
    %322 = vmatpush2.msra.mxu0 0.0
    %323 = vmatprep.subr.mxu0 0.0
    %324 = vmatpush2.msra.mxu0 0.0
    %325 = vmatprep.subr.mxu0 0.0
    %326 = vmatpush2.msra.mxu0 0.0
    %327 = vmatprep.subr.mxu0 0.0
    %328 = vmatpush2.msra.mxu0 0.0
    %329 = vmatprep.subr.mxu0 0.0
    %330 = vmatpush2.msra.mxu0 0.0
    %331 = vmatprep.subr.mxu0 0.0
    %332 = vmatpush2.msra.mxu0 0.0
    %333 = vmatprep.subr.mxu0 0.0
    %334 = vmatpush2.msra.mxu0 0.0
    %335 = vmatprep.subr.mxu0 0.0
    %336 = vmatpush2.msra.mxu0 0.0
    %337 = vmatprep.subr.mxu0 0.0
    %338 = vmatpush2.msra.mxu0 0.0
    %339 = vmatprep.subr.mxu0 0.0
    %340 = vmatpush2.msra.mxu0 0.0
    %341 = vmatprep.subr.mxu0 0.0
    %342 = vmatpush2.msra.mxu0 0.0
    %343 = vmatprep.mubr.f32.mxu0 0.0
    %344 = vmatmul.mubr.f32.gmra.mxu0 %v255
    %v345 = vpop.f32.mrf.mxu0
    %v346 = vadd.f32 %v277, %v345
    %v347 = vpop.f32.mrf.mxu0
    %348 = vdwg.mxu0
    %v349 = vmax.f32 %v346, 0.0
    %v350 = vadd.s32 %v243, 625341585
    %v351 = vshrl.u32 %v350, 16
    %v352 = vxor.u32 %v350, %v351
    %v353 = vmul.u32 %v352, 2146121005
    %v354 = vshrl.u32 %v353, 15
    %v355 = vxor.u32 %v353, %v354
    %v356 = vmul.u32 %v355, 2221713035
    %v357 = vshrl.u32 %v356, 16
    %v358 = vxor.u32 %v356, %v357
    %vm359 = vcmp.lt.u32.totalorder %v358, 2147483648
    %v360 = vmul.f32 %v349, 2.0
    %v361 = vsel %vm359, %v360, 0.0
    %v362 = vld [vmem:[%s8] sm:$0x1]
    %v364 = vlaneseq
    %v365 = vshrl.u32 %v364, 7
    %v366 = vsub.s32 0, %v365
    %v367 = vrot.slane %v362, %v366
    %v369 = vmul.f32 %v361, %v367
    %370 = vadd.xlane.f32.xlu0 %v369
    %v371 = vpop.xlane.xlu0 %370
    %v372 = vld [vmem:[#allocation4] sm:$0x1]
    %v374 = vlaneseq
    %v375 = vshrl.u32 %v374, 7
    %v376 = vsub.s32 0, %v375
    %v377 = vrot.slane %v372, %v376
    %v379 = vadd.f32 %v371, %v377
    %vm380 = vcmask 7168
    %381 = vst.msk [vmem:[%s10] sm:$0xff] %vm380, %v379
    // Predicated region
    $region46: #{tpu_custom_call.1} parent=1 // pred_check
      _
    $region47: #{tpu_custom_call.1} parent=1 // pred_check_branch
      %383 = sbr.rel (0) target = $region49
    $region48: #{tpu_custom_call.1} parent=1 // pred_region
      _
    $region49: #{tpu_custom_call.1} parent=1 // pred_fallthru
      _
    // Predicated region
    $region50: #{tpu_custom_call.1} parent=1 // pred_check
      _
    $region51: #{tpu_custom_call.1} parent=1 // pred_check_branch
      %385 = sbr.rel (0) target = $region53
    $region52: #{tpu_custom_call.1} parent=1 // pred_region
      _
    $region53: #{tpu_custom_call.1} parent=1 // pred_fallthru
      _
    %386 = vsyncpa [#allocation6], 1
    %387 = vsyncpa [#allocation8], 1

</llo_original>
